<compile_context>
chip_gen: v5e
topology: v5e:2x2
jax: 0.10.0
libtpu: 0.0.40
codegen_flags: <defaults>
</compile_context>

<pallas_src>
import functools

import jax
import jax.numpy as jnp
import numpy as np
from jax.experimental import pallas as pl
from jax.experimental.pallas import tpu as pltpu


def _round_up(x: int, m: int) -> int:
    return ((x + m - 1) // m) * m


def _roi_match_kernel(gt_ref, prop_t_ref, gcls_ref, vals_ref, code_ref,
                      *opt_iou_ref, cls_pow2: int):
    gt = gt_ref[...]          # [M_pad, 4] f32
    pr = prop_t_ref[...]      # [4, N_tile] f32 (proposals on lanes)
    gcls = gcls_ref[...]      # [M_pad, 1] i32

    m_pad = gt.shape[0]

    gx1 = gt[:, 0:1]
    gy1 = gt[:, 1:2]
    gx2 = gt[:, 2:3]
    gy2 = gt[:, 3:4]
    px1 = pr[0:1, :]
    py1 = pr[1:2, :]
    px2 = pr[2:3, :]
    py2 = pr[3:4, :]

    # ---- pairwise_iou ----
    iw = jnp.maximum(jnp.minimum(gx2, px2) - jnp.maximum(gx1, px1), 0.0)   # [M, Nt]
    ih = jnp.maximum(jnp.minimum(gy2, py2) - jnp.maximum(gy1, py1), 0.0)
    inter = iw * ih

    area_g = (gx2 - gx1) * (gy2 - gy1)                 # [M, 1]
    area_p = (px2 - px1) * (py2 - py1)                 # [1, Nt]
    union = area_g + area_p - inter
    # EUP reciprocal instead of a VALU divide; guard degenerate zero-area unions.
    inv_union = pl.reciprocal(jnp.maximum(union, 1e-20), approx=False)
    iou = jnp.where(inter > 0.0, inter * inv_union, 0.0)

    if opt_iou_ref:            # only pay the [M, N] HBM writeback when requested
        opt_iou_ref[0][...] = iou.astype(opt_iou_ref[0].dtype)

    # ---- Matcher: max over gt axis + fused argmax/class gather in ONE reduction ----
    max_vals = jnp.max(iou, axis=0, keepdims=True)     # [1, Nt]

    # Pack (gt_row, gt_class) into one int code per gt row; a masked min over the gt
    # axis yields both the argmax row (smallest-index tie-break, matches np.argmax)
    # and that row's class.  Pad rows sit after real rows, so ties at IoU == 0 always
    # resolve to a real row when one exists.
    row_col = jax.lax.broadcasted_iota(jnp.int32, (m_pad, 1), 0)           # [M, 1]
    code_col = row_col * cls_pow2 + gcls                                   # [M, 1]
    big = jnp.int32(m_pad * cls_pow2)
    is_max = iou >= max_vals                                               # [M, Nt]
    min_code = jnp.min(jnp.where(is_max, code_col, big), axis=0,
                       keepdims=True)                                      # [1, Nt] i32

    # Decode (>> / & / fg-bg where / casts) happens in the wrapper on [B, N] vectors.
    vals_ref[...] = max_vals
    code_ref[...] = min_code
    # TODO(synk): if M_pad can exceed ~32 at n_tile >= 512, chunk the gt axis with a
    # running (max, min-code) carry to keep the [M_pad, n_tile] intermediates in vregs.


def roi_label_proposals_padded(gt_p, prop_t_p, gcls_p, *, num_classes,
                               iou_thresh=0.5, n_tile=None, return_iou=False,
                               iou_dtype=jnp.float32):
    """Padded/stacked entry point (jit-friendly).

    gt_p:     [B, M_pad, 4] f32   (M_pad % 8 == 0, zero-area pads after real rows)
    prop_t_p: [B, 4, N_pad] f32   (N_pad % 128 == 0, proposals on the lane axis)
    gcls_p:   [B, M_pad, 1] i32

    Returns stacked padded results: (matched_idxs [B,N_pad] i32, matched_vals [B,N_pad]
    f32, gt_classes_per_prop [B,N_pad] i32), preceded by the IoU matrix
    [B, M_pad, N_pad] when return_iou=True.  Callers trim to their per-image N/M.
    """
    B, m_pad, _ = gt_p.shape
    n_pad = prop_t_p.shape[2]
    if n_tile is None:
        n_tile = n_pad                   # one grid step over N: right for v5e/v6e;
                                         # on v7x the batch axis provides parallelism.
    assert m_pad % 8 == 0 and n_pad % n_tile == 0 and n_tile % 128 == 0
    n_steps = n_pad // n_tile

    cls_pow2 = 1
    while cls_pow2 < max(num_classes, 1):
        cls_pow2 *= 2
    shift = cls_pow2.bit_length() - 1

    kernel = functools.partial(_roi_match_kernel, cls_pow2=cls_pow2)

    out_shapes = [jax.ShapeDtypeStruct((B, 1, n_pad), jnp.float32),
                  jax.ShapeDtypeStruct((B, 1, n_pad), jnp.int32)]
    out_specs = [pl.BlockSpec((None, 1, n_tile), lambda b, j: (b, 0, j)),
                 pl.BlockSpec((None, 1, n_tile), lambda b, j: (b, 0, j))]
    if return_iou:
        out_shapes.append(jax.ShapeDtypeStruct((B, m_pad, n_pad), iou_dtype))
        out_specs.append(pl.BlockSpec((None, m_pad, n_tile), lambda b, j: (b, 0, j)))

    outs = pl.pallas_call(
        kernel,
        out_shape=tuple(out_shapes),
        grid=(B, n_steps),
        in_specs=[
            pl.BlockSpec((None, m_pad, 4), lambda b, j: (b, 0, 0)),    # gt: resident per image
            pl.BlockSpec((None, 4, n_tile), lambda b, j: (b, 0, j)),   # proposals: lane tiles
            pl.BlockSpec((None, m_pad, 1), lambda b, j: (b, 0, 0)),    # gt classes
        ],
        out_specs=tuple(out_specs),
        compiler_params=pltpu.CompilerParams(
            dimension_semantics=("parallel", "parallel")),             # megacore on v7x
    )(gt_p, prop_t_p, gcls_p)

    vals = outs[0][:, 0, :]                                            # [B, N_pad] f32
    code = outs[1][:, 0, :]                                            # [B, N_pad] i32
    matched_idxs = jnp.right_shift(code, shift)
    matched_cls = jnp.bitwise_and(code, cls_pow2 - 1)
    # matched_labels: fg (1) if max IoU >= thresh else bg (0); allow_low_quality=False.
    gt_classes_per_prop = jnp.where(vals >= iou_thresh, matched_cls,
                                    num_classes).astype(jnp.int32)
    if return_iou:
        return outs[2], matched_idxs, vals, gt_classes_per_prop
    return matched_idxs, vals, gt_classes_per_prop


def roi_label_proposals_batch(gt_boxes_list, prop_boxes_list, gt_classes_list, *,
                              num_classes, iou_thresh=0.5, n_tile=None,
                              return_iou=False, iou_dtype=jnp.float32):
    """Ragged per-image lists (as in detectron2): pad ONCE per batch, one pallas_call."""
    B = len(prop_boxes_list)
    m_max = max((int(g.shape[0]) for g in gt_boxes_list), default=0)
    n_max = max((int(p.shape[0]) for p in prop_boxes_list), default=0)
    m_pad = _round_up(max(m_max, 1), 8)
    lane = n_tile if n_tile is not None else 128
    n_pad = _round_up(max(n_max, 1), lane)

    gt_p = np.zeros((B, m_pad, 4), np.float32)
    gcls_p = np.zeros((B, m_pad, 1), np.int32)
    prop_t = np.zeros((B, 4, n_pad), np.float32)
    for b in range(B):
        g = np.asarray(gt_boxes_list[b], np.float32).reshape(-1, 4)
        c = np.asarray(gt_classes_list[b], np.int32).reshape(-1)
        p = np.asarray(prop_boxes_list[b], np.float32).reshape(-1, 4)
        if g.shape[0]:
            gt_p[b, :g.shape[0]] = g
            gcls_p[b, :c.shape[0], 0] = c
        if p.shape[0]:
            prop_t[b, :, :p.shape[0]] = p.T

    return roi_label_proposals_padded(
        jnp.asarray(gt_p), jnp.asarray(prop_t), jnp.asarray(gcls_p),
        num_classes=num_classes, iou_thresh=iou_thresh, n_tile=n_tile,
        return_iou=return_iou, iou_dtype=iou_dtype)


def _reference(gt_boxes, prop_boxes, gt_classes, num_classes, iou_thresh):
    gt = np.asarray(gt_boxes, np.float32)
    pr = np.asarray(prop_boxes, np.float32)
    gcls = np.asarray(gt_classes, np.int32)
    ix1 = np.maximum(gt[:, None, 0], pr[None, :, 0])
    iy1 = np.maximum(gt[:, None, 1], pr[None, :, 1])
    ix2 = np.minimum(gt[:, None, 2], pr[None, :, 2])
    iy2 = np.minimum(gt[:, None, 3], pr[None, :, 3])
    inter = np.maximum(ix2 - ix1, 0) * np.maximum(iy2 - iy1, 0)
    area_g = (gt[:, 2] - gt[:, 0]) * (gt[:, 3] - gt[:, 1])
    area_p = (pr[:, 2] - pr[:, 0]) * (pr[:, 3] - pr[:, 1])
    union = area_g[:, None] + area_p[None, :] - inter
    iou = np.where(inter > 0, inter / union, 0.0)
    idx = np.argmax(iou, axis=0)          # first-max tie-break, matches kernel min-code
    val = iou.max(axis=0)
    labels = (val >= iou_thresh).astype(np.int32)
    cls = gcls[idx]
    cls = np.where(labels == 0, num_classes, cls)
    return iou, idx.astype(np.int32), val.astype(np.float32), cls.astype(np.int32)


if __name__ == "__main__":
    key = jax.random.PRNGKey(0)
    keys = jax.random.split(key, 15)

    NUM_CLASSES = 5
    IOU_THRESH = 0.5
    Ms = [10, 6, 0]          # third image exercises the has_gt == False branch
    Ns = [1000, 640, 256]

    def make_boxes(kxy, kwh, n):
        xy = jax.random.uniform(kxy, (n, 2), minval=0.0, maxval=50.0)
        wh = jax.random.uniform(kwh, (n, 2), minval=5.0, maxval=30.0)
        return jnp.concatenate([xy, xy + wh], axis=1)   # x1, y1, x2, y2

    gt_list, prop_list, cls_list = [], [], []
    for i, (M, N) in enumerate(zip(Ms, Ns)):
        k = keys[5 * i: 5 * i + 5]
        gt_list.append(make_boxes(k[0], k[1], M))
        prop_list.append(make_boxes(k[2], k[3], N))
        cls_list.append(jax.random.randint(k[4], (M,), 0, NUM_CLASSES, dtype=jnp.int32))

    # --- primary (bandwidth-lean, batched) path: no [M, N] IoU writeback ---
    idx, val, cls = roi_label_proposals_batch(
        gt_list, prop_list, cls_list,
        num_classes=NUM_CLASSES, iou_thresh=IOU_THRESH)
    jax.block_until_ready((idx, val, cls))

    for b, (M, N) in enumerate(zip(Ms, Ns)):
        idx_b = np.asarray(idx[b, :N])
        val_b = np.asarray(val[b, :N])
        cls_b = np.asarray(cls[b, :N])
        if M == 0:
            # has_gt == False: everything labeled background, best IoU is zero.
            np.testing.assert_array_equal(cls_b, NUM_CLASSES)
            np.testing.assert_allclose(val_b, 0.0, atol=0.0)
            continue
        r_iou, r_idx, r_val, r_cls = _reference(
            gt_list[b], prop_list[b], cls_list[b], NUM_CLASSES, IOU_THRESH)
        np.testing.assert_allclose(val_b, r_val, rtol=1e-5, atol=1e-6)
        # matched_idxs must agree except at exact ties (any max index is valid there).
        mism = np.nonzero(idx_b != r_idx)[0]
        if mism.size:
            np.testing.assert_allclose(r_iou[idx_b[mism], mism],
                                       r_iou[r_idx[mism], mism], rtol=0, atol=1e-6)
        # class labels consistent with the kernel's own match, and with the reference
        # wherever the decision is unambiguous.
        gcls_np = np.asarray(cls_list[b])
        exp_cls = np.where(val_b >= IOU_THRESH, gcls_np[idx_b], NUM_CLASSES)
        np.testing.assert_array_equal(cls_b, exp_cls)
        safe = (np.abs(r_val - IOU_THRESH) > 1e-5) & (idx_b == r_idx)
        np.testing.assert_array_equal(cls_b[safe], r_cls[safe])

    # --- secondary path: full IoU matrix output requested ---
    iou_out, idx2, val2, cls2 = roi_label_proposals_batch(
        gt_list, prop_list, cls_list, num_classes=NUM_CLASSES, iou_thresh=IOU_THRESH,
        return_iou=True)
    jax.block_until_ready((iou_out, idx2, val2, cls2))
    for b, (M, N) in enumerate(zip(Ms, Ns)):
        if M == 0:
            continue
        r_iou, _, r_val, _ = _reference(
            gt_list[b], prop_list[b], cls_list[b], NUM_CLASSES, IOU_THRESH)
        np.testing.assert_allclose(np.asarray(iou_out[b, :M, :N]), r_iou,
                                   rtol=1e-5, atol=1e-6)
        np.testing.assert_allclose(np.asarray(val2[b, :N]), r_val,
                                   rtol=1e-5, atol=1e-6)

    # TODO(synk): subsample_labels (random fg/bg sampling via randperm), the Instances
    # bookkeeping / gt_* field propagation and event-storage logging have no clean
    # Pallas equivalent and are left to the host-side caller.
    print("KERNEL_OK")
</pallas_src>

<mosaic_0001>
module attributes {stable_mosaic.version = 11 : i64} {
  func.func @_roi_match_kernel(%arg0: i32, %arg1: i32, %arg2: memref<1x16x4xf32, #tpu.memory_space<vmem>>, %arg3: memref<1x4x1024xf32, #tpu.memory_space<vmem>>, %arg4: memref<1x16x1xi32, #tpu.memory_space<vmem>>, %arg5: memref<1x1x1024xf32, #tpu.memory_space<vmem>>, %arg6: memref<1x1x1024xi32, #tpu.memory_space<vmem>>) attributes {dimension_semantics = [#tpu.dimension_semantics<parallel>, #tpu.dimension_semantics<parallel>], iteration_bounds = array<i64: 3, 1>, scalar_prefetch = 0 : i64, scratch_operands = 0 : i64, tpu.core_type = #tpu.core_type<tc>, window_params = [{transform_indices = @transform_0, window_bounds = array<i64: 1, 16, 4>}, {transform_indices = @transform_1, window_bounds = array<i64: 1, 4, 1024>}, {transform_indices = @transform_2, window_bounds = array<i64: 1, 16, 1>}, {transform_indices = @transform_3, window_bounds = array<i64: 1, 1, 1024>}, {transform_indices = @transform_4, window_bounds = array<i64: 1, 1, 1024>}]} {
    %c0 = arith.constant 0 : index
    %c0_0 = arith.constant 0 : index
    %c0_1 = arith.constant 0 : index
    %0 = vector.load %arg2[%c0, %c0_0, %c0_1] : memref<1x16x4xf32, #tpu.memory_space<vmem>>, vector<1x16x4xf32>
    %1 = vector.shape_cast %0 : vector<1x16x4xf32> to vector<16x4xf32>
    %c0_2 = arith.constant 0 : index
    %c0_3 = arith.constant 0 : index
    %c0_4 = arith.constant 0 : index
    %2 = vector.load %arg3[%c0_2, %c0_3, %c0_4] : memref<1x4x1024xf32, #tpu.memory_space<vmem>>, vector<1x4x1024xf32>
    %3 = vector.shape_cast %2 : vector<1x4x1024xf32> to vector<4x1024xf32>
    %c0_5 = arith.constant 0 : index
    %c0_6 = arith.constant 0 : index
    %c0_7 = arith.constant 0 : index
    %4 = vector.load %arg4[%c0_5, %c0_6, %c0_7] : memref<1x16x1xi32, #tpu.memory_space<vmem>>, vector<1x16x1xi32>
    %5 = vector.shape_cast %4 : vector<1x16x1xi32> to vector<16x1xi32>
    %6 = vector.extract_strided_slice %1 {offsets = [0, 0], sizes = [16, 1], strides = [1, 1]} : vector<16x4xf32> to vector<16x1xf32>
    %7 = vector.extract_strided_slice %1 {offsets = [0, 1], sizes = [16, 1], strides = [1, 1]} : vector<16x4xf32> to vector<16x1xf32>
    %8 = vector.extract_strided_slice %1 {offsets = [0, 2], sizes = [16, 1], strides = [1, 1]} : vector<16x4xf32> to vector<16x1xf32>
    %9 = vector.extract_strided_slice %1 {offsets = [0, 3], sizes = [16, 1], strides = [1, 1]} : vector<16x4xf32> to vector<16x1xf32>
    %10 = vector.extract_strided_slice %3 {offsets = [0, 0], sizes = [1, 1024], strides = [1, 1]} : vector<4x1024xf32> to vector<1x1024xf32>
    %11 = vector.extract_strided_slice %3 {offsets = [1, 0], sizes = [1, 1024], strides = [1, 1]} : vector<4x1024xf32> to vector<1x1024xf32>
    %12 = vector.extract_strided_slice %3 {offsets = [2, 0], sizes = [1, 1024], strides = [1, 1]} : vector<4x1024xf32> to vector<1x1024xf32>
    %13 = vector.extract_strided_slice %3 {offsets = [3, 0], sizes = [1, 1024], strides = [1, 1]} : vector<4x1024xf32> to vector<1x1024xf32>
    %14 = vector.broadcast %8 : vector<16x1xf32> to vector<16x1024xf32>
    %15 = vector.broadcast %12 : vector<1x1024xf32> to vector<16x1024xf32>
    %16 = arith.minimumf %14, %15 : vector<16x1024xf32>
    %17 = vector.broadcast %6 : vector<16x1xf32> to vector<16x1024xf32>
    %18 = vector.broadcast %10 : vector<1x1024xf32> to vector<16x1024xf32>
    %19 = arith.maximumf %17, %18 : vector<16x1024xf32>
    %20 = arith.subf %16, %19 : vector<16x1024xf32>
    %cst = arith.constant 0.000000e+00 : f32
    %21 = vector.broadcast %cst : f32 to vector<16x1024xf32>
    %22 = arith.maximumf %20, %21 : vector<16x1024xf32>
    %23 = vector.broadcast %9 : vector<16x1xf32> to vector<16x1024xf32>
    %24 = vector.broadcast %13 : vector<1x1024xf32> to vector<16x1024xf32>
    %25 = arith.minimumf %23, %24 : vector<16x1024xf32>
    %26 = vector.broadcast %7 : vector<16x1xf32> to vector<16x1024xf32>
    %27 = vector.broadcast %11 : vector<1x1024xf32> to vector<16x1024xf32>
    %28 = arith.maximumf %26, %27 : vector<16x1024xf32>
    %29 = arith.subf %25, %28 : vector<16x1024xf32>
    %cst_8 = arith.constant 0.000000e+00 : f32
    %30 = vector.broadcast %cst_8 : f32 to vector<16x1024xf32>
    %31 = arith.maximumf %29, %30 : vector<16x1024xf32>
    %32 = arith.mulf %22, %31 : vector<16x1024xf32>
    %33 = arith.subf %8, %6 : vector<16x1xf32>
    %34 = arith.subf %9, %7 : vector<16x1xf32>
    %35 = arith.mulf %33, %34 : vector<16x1xf32>
    %36 = arith.subf %12, %10 : vector<1x1024xf32>
    %37 = arith.subf %13, %11 : vector<1x1024xf32>
    %38 = arith.mulf %36, %37 : vector<1x1024xf32>
    %39 = vector.broadcast %35 : vector<16x1xf32> to vector<16x1024xf32>
    %40 = vector.broadcast %38 : vector<1x1024xf32> to vector<16x1024xf32>
    %41 = arith.addf %39, %40 : vector<16x1024xf32>
    %42 = arith.subf %41, %32 : vector<16x1024xf32>
    %cst_9 = arith.constant 9.99999968E-21 : f32
    %43 = vector.broadcast %cst_9 : f32 to vector<16x1024xf32>
    %44 = arith.maximumf %42, %43 : vector<16x1024xf32>
    %45 = tpu.reciprocal %44 : vector<16x1024xf32> -> vector<16x1024xf32>
    %cst_10 = arith.constant 0.000000e+00 : f32
    %46 = vector.broadcast %cst_10 : f32 to vector<16x1024xf32>
    %47 = arith.cmpf ogt, %32, %46 : vector<16x1024xf32>
    %48 = arith.mulf %32, %45 : vector<16x1024xf32>
    %cst_11 = arith.constant 0.000000e+00 : f32
    %49 = vector.broadcast %cst_11 : f32 to vector<16x1024xf32>
    %50 = arith.select %47, %48, %49 : vector<16x1024xi1>, vector<16x1024xf32>
    %cst_12 = arith.constant dense<0xFF800000> : vector<1024xf32>
    %51 = vector.multi_reduction <maximumf>, %50, %cst_12 [0] : vector<16x1024xf32> to vector<1024xf32>
    %52 = vector.shape_cast %51 : vector<1024xf32> to vector<1x1024xf32>
    %53 = tpu.iota {dimensions = array<i32: 0>} : vector<16x1xi32>
    %c8_i32 = arith.constant 8 : i32
    %54 = vector.broadcast %c8_i32 : i32 to vector<16x1xi32>
    %55 = arith.muli %53, %54 : vector<16x1xi32>
    %56 = arith.addi %55, %5 : vector<16x1xi32>
    %57 = vector.broadcast %52 : vector<1x1024xf32> to vector<16x1024xf32>
    %58 = arith.cmpf oge, %50, %57 : vector<16x1024xf32>
    %c128_i32 = arith.constant 128 : i32
    %59 = vector.shape_cast %56 : vector<16x1xi32> to vector<16x1xi32>
    %60 = vector.broadcast %59 : vector<16x1xi32> to vector<16x1024xi32>
    %61 = vector.broadcast %c128_i32 : i32 to vector<16x1024xi32>
    %62 = arith.select %58, %60, %61 : vector<16x1024xi1>, vector<16x1024xi32>
    %cst_13 = arith.constant dense<2147483647> : vector<1024xi32>
    %63 = vector.multi_reduction <minsi>, %62, %cst_13 [0] : vector<16x1024xi32> to vector<1024xi32>
    %64 = vector.shape_cast %63 : vector<1024xi32> to vector<1x1024xi32>
    %c0_14 = arith.constant 0 : index
    %c0_15 = arith.constant 0 : index
    %c0_16 = arith.constant 0 : index
    %65 = vector.load %arg5[%c0_14, %c0_15, %c0_16] : memref<1x1x1024xf32, #tpu.memory_space<vmem>>, vector<1x1x1024xf32>
    %66 = vector.shape_cast %65 : vector<1x1x1024xf32> to vector<1x1024xf32>
    %67 = vector.shape_cast %52 : vector<1x1024xf32> to vector<1x1x1024xf32>
    tpu.vector_store %arg5[%c0_14, %c0_15, %c0_16], %67 {strides = array<i32>} : memref<1x1x1024xf32, #tpu.memory_space<vmem>>, vector<1x1x1024xf32>,
    %c0_17 = arith.constant 0 : index
    %c0_18 = arith.constant 0 : index
    %c0_19 = arith.constant 0 : index
    %68 = vector.load %arg6[%c0_17, %c0_18, %c0_19] : memref<1x1x1024xi32, #tpu.memory_space<vmem>>, vector<1x1x1024xi32>
    %69 = vector.shape_cast %68 : vector<1x1x1024xi32> to vector<1x1024xi32>
    %70 = vector.shape_cast %64 : vector<1x1024xi32> to vector<1x1x1024xi32>
    tpu.vector_store %arg6[%c0_17, %c0_18, %c0_19], %70 {strides = array<i32>} : memref<1x1x1024xi32, #tpu.memory_space<vmem>>, vector<1x1x1024xi32>,
    return
  }
  func.func @transform_0(%arg0: i32, %arg1: i32) -> (i32, i32, i32) {
    %c0_i32 = arith.constant 0 : i32
    %c0_i32_0 = arith.constant 0 : i32
    %c0_i32_1 = arith.constant 0 : i32
    return %arg0, %c0_i32, %c0_i32_0 : i32, i32, i32
  }
  func.func @transform_1(%arg0: i32, %arg1: i32) -> (i32, i32, i32) {
    %c0_i32 = arith.constant 0 : i32
    %c0_i32_0 = arith.constant 0 : i32
    return %arg0, %c0_i32, %arg1 : i32, i32, i32
  }
  func.func @transform_2(%arg0: i32, %arg1: i32) -> (i32, i32, i32) {
    %c0_i32 = arith.constant 0 : i32
    %c0_i32_0 = arith.constant 0 : i32
    %c0_i32_1 = arith.constant 0 : i32
    return %arg0, %c0_i32, %c0_i32_0 : i32, i32, i32
  }
  func.func @transform_3(%arg0: i32, %arg1: i32) -> (i32, i32, i32) {
    %c0_i32 = arith.constant 0 : i32
    %c0_i32_0 = arith.constant 0 : i32
    return %arg0, %c0_i32, %arg1 : i32, i32, i32
  }
  func.func @transform_4(%arg0: i32, %arg1: i32) -> (i32, i32, i32) {
    %c0_i32 = arith.constant 0 : i32
    %c0_i32_0 = arith.constant 0 : i32
    return %arg0, %c0_i32, %arg1 : i32, i32, i32
  }
}

</mosaic_0001>

<llo_original>
// kernel: tpu_custom_call.1
$region0: #{tpu_custom_call.1}
  #allocation0 [shape = 'u32[]', space=smem, size = 0x4, offset = 0x4, fixed_abs, tag = 'smem constant byte address 0x4 - core index']
  #allocation1 [shape = 'u32[72,128]{1,0:T(1,128)}', space=vmem, size = 0x9000, scoped, tag = 'internal scratch']
  %s0 = inlined_call_operand.vmem [shape: f32[3,16,4], index: 0, kind: input, shape index: {}]
  %s1 = inlined_call_operand.vmem [shape: f32[3,4,1024], index: 1, kind: input, shape index: {}]
  %s2 = inlined_call_operand.vmem [shape: s32[3,16,1], index: 2, kind: input, shape index: {}]
  %s3 = inlined_call_operand.hbm [shape: f32[3,1,1024], index: 3, kind: output, shape index: {0}]
  %s4 = inlined_call_operand.hbm [shape: s32[3,1,1024], index: 4, kind: output, shape index: {1}]
  %5 = xla_tuple %s3, %s4
  %s6 = sld [smem:[#allocation0]]
  $region53: #{tpu_custom_call.1} parent=0
    _
  %s8 = ssub.s32 1, %s6
  %s9 = scalar_select 0, %s8, %s6
  $region1: #{tpu_custom_call.1} parent=0
    #allocation2 [shape = 'u8[8192]{0}', space=vmem, size = 0x2000, scoped, tag = 'output window, operand 0']
    #allocation3 [shape = 's32[2]{0}', space=sflag, size = 0x8, scoped, tag = 'scoped memory for tpu_custom_call.1']
    #allocation4 [shape = 'u8[8192]{0}', space=vmem, size = 0x2000, scoped, tag = 'output window, operand 1']
    #allocation5 [shape = 's32[2]{0}', space=sflag, size = 0x8, scoped, tag = 'scoped memory for tpu_custom_call.1']
    %10 = vsyncpa [#allocation3], 0
    %s11 = scalar_lea.sflag [#allocation3], 1
    %12 = vsyncpa %s11, 0
    %13 = vsyncpa [#allocation5], 0
    %s14 = scalar_lea.sflag [#allocation5], 1
    %15 = vsyncpa %s14, 0
    loop: start=0, step=1, limit=5
    $region2: #{tpu_custom_call.1} parent=1 // loop_pre_header
      _
    $region3: #{tpu_custom_call.1} parent=1 // loop_header
      %s17 = sphi 0, %s21
      %p18 = scmp.ge.s32.totalorder %s17, 5
      %s24 = sphi 0, %s36
      %s25 = sphi 0, %s32
      %s26 = sphi 0, %s24
      %s27 = sphi 0, %s25
      %s28 = sphi 0, %s26
      %s29 = sphi 0, %s27
      %s39 = sphi 0, %s41
      %s42 = sphi 0, %s39
      %s43 = sphi 0, %s42
      %s59 = sphi 0, %s43
      %s67 = sphi 0, %s69
      %s70 = sphi 0, %s67
      %s71 = sphi 0, %s70
      %s87 = sphi 0, %s71
      %s93 = sphi 0, %s95
      %s96 = sphi 0, %s93
      %s97 = sphi 0, %s96
      %s113 = sphi 0, %s97
      %s121 = sphi 0, %s123
      %s124 = sphi 0, %s121
      %s125 = sphi 0, %s124
      %s141 = sphi 0, %s125
      %s149 = sphi 0, %s151
      %s152 = sphi 0, %s149
      %s153 = sphi 0, %s152
      %s169 = sphi 0, %s153
    $region4: #{tpu_custom_call.1} parent=1 // loop_header_branch
      %20 = sbr.rel (%p18) target = $region8
    $region5: #{tpu_custom_call.1} parent=1 // loop_body
      %s22 = ssub.s32 %s17, 1
      %s23 = ssub.s32 %s17, 2
      %s30 = sadd.s32 1, %s25
      %p31 = scmp.ge.s32.totalorder %s30, 1
      %s32 = scalar_select %p31, 0, %s30
      %s33 = sadd.s32 1, %s24
      %s34 = scalar_select %p31, %s33, %s24
      %p35 = scmp.ge.s32.totalorder %s34, 3
      %s36 = scalar_select %p35, 0, %s34
      %s37 = ssub.s32 %s24, %s36
      %p38 = scmp.eq.s32.totalorder %s37, 0
      %s40 = sadd.s32 %s39, 1
      %s41 = scalar_select %p38, %s39, %s40
      %p44 = pneg %p38
      %p45 = scmp.eq.s32.totalorder %s17, 2
      %p46 = por %p44, %p45
      %p47 = scmp.ne.s32.totalorder %s39, %s42
      %p48 = scmp.eq.s32.totalorder %s17, 0
      %p49 = por %p47, %p48
      %p50 = scmp.ne.s32.totalorder %s39, %s42
      %p51 = scmp.eq.s32.totalorder %s22, 2
      %p52 = por %p50, %p51
      %p53 = scmp.ne.s32.totalorder %s42, %s43
      %p54 = scmp.eq.s32.totalorder %s22, 0
      %p55 = por %p53, %p54
      %p56 = scmp.ne.s32.totalorder %s42, %s43
      %p57 = scmp.eq.s32.totalorder %s23, 2
      %p58 = por %p56, %p57
      %p60 = scmp.ne.s32.totalorder %s43, %s59
      %p61 = scmp.eq.s32.totalorder %s23, 0
      %p62 = por %p60, %p61
      %s63 = ssub.s32 %s24, %s36
      %s64 = ssub.s32 %s25, %s32
      %s65 = sor.u32 %s63, %s64
      %p66 = scmp.eq.s32.totalorder %s65, 0
      %s68 = sadd.s32 %s67, 1
      %s69 = scalar_select %p66, %s67, %s68
      %p72 = pneg %p66
      %p73 = scmp.eq.s32.totalorder %s17, 2
      %p74 = por %p72, %p73
      %p75 = scmp.ne.s32.totalorder %s67, %s70
      %p76 = scmp.eq.s32.totalorder %s17, 0
      %p77 = por %p75, %p76
      %p78 = scmp.ne.s32.totalorder %s67, %s70
      %p79 = scmp.eq.s32.totalorder %s22, 2
      %p80 = por %p78, %p79
      %p81 = scmp.ne.s32.totalorder %s70, %s71
      %p82 = scmp.eq.s32.totalorder %s22, 0
      %p83 = por %p81, %p82
      %p84 = scmp.ne.s32.totalorder %s70, %s71
      %p85 = scmp.eq.s32.totalorder %s23, 2
      %p86 = por %p84, %p85
      %p88 = scmp.ne.s32.totalorder %s71, %s87
      %p89 = scmp.eq.s32.totalorder %s23, 0
      %p90 = por %p88, %p89
      %s91 = ssub.s32 %s24, %s36
      %p92 = scmp.eq.s32.totalorder %s91, 0
      %s94 = sadd.s32 %s93, 1
      %s95 = scalar_select %p92, %s93, %s94
      %p98 = pneg %p92
      %p99 = scmp.eq.s32.totalorder %s17, 2
      %p100 = por %p98, %p99
      %p101 = scmp.ne.s32.totalorder %s93, %s96
      %p102 = scmp.eq.s32.totalorder %s17, 0
      %p103 = por %p101, %p102
      %p104 = scmp.ne.s32.totalorder %s93, %s96
      %p105 = scmp.eq.s32.totalorder %s22, 2
      %p106 = por %p104, %p105
      %p107 = scmp.ne.s32.totalorder %s96, %s97
      %p108 = scmp.eq.s32.totalorder %s22, 0
      %p109 = por %p107, %p108
      %p110 = scmp.ne.s32.totalorder %s96, %s97
      %p111 = scmp.eq.s32.totalorder %s23, 2
      %p112 = por %p110, %p111
      %p114 = scmp.ne.s32.totalorder %s97, %s113
      %p115 = scmp.eq.s32.totalorder %s23, 0
      %p116 = por %p114, %p115
      %s117 = ssub.s32 %s24, %s36
      %s118 = ssub.s32 %s25, %s32
      %s119 = sor.u32 %s117, %s118
      %p120 = scmp.eq.s32.totalorder %s119, 0
      %s122 = sadd.s32 %s121, 1
      %s123 = scalar_select %p120, %s121, %s122
      %p126 = pneg %p120
      %p127 = scmp.eq.s32.totalorder %s17, 2
      %p128 = por %p126, %p127
      %p129 = scmp.ne.s32.totalorder %s121, %s124
      %p130 = scmp.eq.s32.totalorder %s17, 0
      %p131 = por %p129, %p130
      %p132 = scmp.ne.s32.totalorder %s121, %s124
      %p133 = scmp.eq.s32.totalorder %s22, 2
      %p134 = por %p132, %p133
      %p135 = scmp.ne.s32.totalorder %s124, %s125
      %p136 = scmp.eq.s32.totalorder %s22, 0
      %p137 = por %p135, %p136
      %p138 = scmp.ne.s32.totalorder %s124, %s125
      %p139 = scmp.eq.s32.totalorder %s23, 2
      %p140 = por %p138, %p139
      %p142 = scmp.ne.s32.totalorder %s125, %s141
      %p143 = scmp.eq.s32.totalorder %s23, 0
      %p144 = por %p142, %p143
      %s145 = ssub.s32 %s24, %s36
      %s146 = ssub.s32 %s25, %s32
      %s147 = sor.u32 %s145, %s146
      %p148 = scmp.eq.s32.totalorder %s147, 0
      %s150 = sadd.s32 %s149, 1
      %s151 = scalar_select %p148, %s149, %s150
      %p154 = pneg %p148
      %p155 = scmp.eq.s32.totalorder %s17, 2
      %p156 = por %p154, %p155
      %p157 = scmp.ne.s32.totalorder %s149, %s152
      %p158 = scmp.eq.s32.totalorder %s17, 0
      %p159 = por %p157, %p158
      %p160 = scmp.ne.s32.totalorder %s149, %s152
      %p161 = scmp.eq.s32.totalorder %s22, 2
      %p162 = por %p160, %p161
      %p163 = scmp.ne.s32.totalorder %s152, %s153
      %p164 = scmp.eq.s32.totalorder %s22, 0
      %p165 = por %p163, %p164
      %p166 = scmp.ne.s32.totalorder %s152, %s153
      %p167 = scmp.eq.s32.totalorder %s23, 2
      %p168 = por %p166, %p167
      %p170 = scmp.ne.s32.totalorder %s153, %s169
      %p171 = scmp.eq.s32.totalorder %s23, 0
      %p172 = por %p170, %p171
      %p173 = scmp.le.s32.totalorder 1, %s17
      %p174 = scmp.lt.s32.totalorder %s17, 4
      %p175 = pnand %p173, %p174
      %p176 = pneg %p175
      // Predicated region
      $region9: #{tpu_custom_call.1} parent=5 // pred_check
        _
      $region10: #{tpu_custom_call.1} parent=5 // pred_check_branch
        %178 = sbr.rel (%p175) target = $region12
      $region11: #{tpu_custom_call.1} parent=5 // pred_region
        %s179 = ssub.s32 %s17, 1
      $region12: #{tpu_custom_call.1} parent=5 // pred_fallthru
        _
      %p180 = scmp.lt.s32.totalorder %s17, 3
      // Predicated region
      $region13: #{tpu_custom_call.1} parent=5 // pred_check
        %p181 = pneg %p180
      $region14: #{tpu_custom_call.1} parent=5 // pred_check_branch
        %183 = sbr.rel (%p181) target = $region16
      $region15: #{tpu_custom_call.1} parent=5 // pred_region
        // Predicated region
        $region17: #{tpu_custom_call.1} parent=15 // pred_check
          %p184 = pneg %p49
        $region18: #{tpu_custom_call.1} parent=15 // pred_check_branch
          %186 = sbr.rel (%p184) target = $region20
        $region19: #{tpu_custom_call.1} parent=15 // pred_region
          %p187 = scmp.lt.s32.totalorder %s24, 2
          %s188 = scalar_select %p187, %s24, 2
          %s189 = smul.addr %s188, 2
          %s190 = smul.addr %s189, 8
          %s191 = scalar_lea.vmem %s0, %s190
        $region20: #{tpu_custom_call.1} parent=15 // pred_fallthru
          _
        // Predicated region
        $region21: #{tpu_custom_call.1} parent=15 // pred_check
          %p192 = pneg %p77
        $region22: #{tpu_custom_call.1} parent=15 // pred_check_branch
          %194 = sbr.rel (%p192) target = $region24
        $region23: #{tpu_custom_call.1} parent=15 // pred_region
          %s195 = smul.u32 8, %s25
          %p196 = scmp.lt.s32.totalorder %s24, 2
          %s197 = scalar_select %p196, %s24, 2
          %p198 = scmp.lt.s32.totalorder %s195, 7
          %s199 = scalar_select %p198, %s195, 7
          %s200 = smul.addr %s197, 8
          %s201 = sadd.s32 %s199, %s200
          %s202 = smul.addr %s201, 4
          %s203 = scalar_lea.vmem %s1, %s202
          %s204 = smul.u32 8, %s25
        $region24: #{tpu_custom_call.1} parent=15 // pred_fallthru
          _
        // Predicated region
        $region25: #{tpu_custom_call.1} parent=15 // pred_check
          %p205 = pneg %p103
        $region26: #{tpu_custom_call.1} parent=15 // pred_check_branch
          %207 = sbr.rel (%p205) target = $region28
        $region27: #{tpu_custom_call.1} parent=15 // pred_region
          %p208 = scmp.lt.s32.totalorder %s24, 2
          %s209 = scalar_select %p208, %s24, 2
          %s210 = smul.addr %s209, 2
          %s211 = smul.addr %s210, 8
          %s212 = scalar_lea.vmem %s2, %s211
        $region28: #{tpu_custom_call.1} parent=15 // pred_fallthru
          _
      $region16: #{tpu_custom_call.1} parent=5 // pred_fallthru
        _
      %p213 = scmp.le.s32.totalorder 1, %s17
      %p214 = scmp.lt.s32.totalorder %s17, 4
      %p215 = pnand %p213, %p214
      %p216 = pneg %p215
      // Predicated region
      $region29: #{tpu_custom_call.1} parent=5 // pred_check
        _
      $region30: #{tpu_custom_call.1} parent=5 // pred_check_branch
        %218 = sbr.rel (%p215) target = $region32
      $region31: #{tpu_custom_call.1} parent=5 // pred_region
        %s219 = ssub.s32 %s17, 1
        %p220 = scmp.lt.s32.totalorder %s26, 2
        %s221 = scalar_select %p220, %s26, 2
        %s222 = smul.addr %s221, 2
        %s223 = smul.addr %s222, 8
        %s224 = scalar_lea.vmem %s0, %s223
        %p225 = pneg %p55
        %p226 = pneg %p52
        %s227 = smul.u32 8, %s27
        %p228 = scmp.lt.s32.totalorder %s26, 2
        %s229 = scalar_select %p228, %s26, 2
        %p230 = scmp.lt.s32.totalorder %s227, 7
        %s231 = scalar_select %p230, %s227, 7
        %s232 = smul.addr %s229, 8
        %s233 = sadd.s32 %s231, %s232
        %s234 = smul.addr %s233, 4
        %s235 = scalar_lea.vmem %s1, %s234
        %p236 = pneg %p83
        %p237 = pneg %p80
        %p238 = scmp.lt.s32.totalorder %s26, 2
        %s239 = scalar_select %p238, %s26, 2
        %s240 = smul.addr %s239, 2
        %s241 = smul.addr %s240, 8
        %s242 = scalar_lea.vmem %s2, %s241
        %p243 = pneg %p109
        %p244 = pneg %p106
        %p245 = pneg %p137
        %p246 = pneg %p134
        %s247 = sand.u32 %s124, 1
        %s248 = scalar_lea.sflag [#allocation3], %s247
        %s249 = sand.u32 %s124, 1
        %s250 = smul.addr %s249, 8
        %s251 = scalar_lea.vmem [#allocation2], %s250
        %p252 = pneg %p165
        %p253 = pneg %p162
        %s254 = sand.u32 %s152, 1
        %s255 = scalar_lea.sflag [#allocation5], %s254
        %s256 = sand.u32 %s152, 1
        %s257 = smul.addr %s256, 8
        %s258 = scalar_lea.vmem [#allocation4], %s257
        %p259 = scmp.lt.s32.totalorder %s26, 2
        %s260 = scalar_select %p259, %s26, 2
        %s261 = smul.addr %s260, 2
        %s262 = smul.addr %s261, 8
        %s263 = scalar_lea.vmem %s0, %s262
        %s264 = smul.u32 8, %s27
        %p265 = scmp.lt.s32.totalorder %s26, 2
        %s266 = scalar_select %p265, %s26, 2
        %p267 = scmp.lt.s32.totalorder %s264, 7
        %s268 = scalar_select %p267, %s264, 7
        %s269 = smul.addr %s266, 8
        %s270 = sadd.s32 %s268, %s269
        %s271 = smul.addr %s270, 4
        %s272 = scalar_lea.vmem %s1, %s271
        %s273 = smul.u32 8, %s27
        %p274 = scmp.lt.s32.totalorder %s26, 2
        %s275 = scalar_select %p274, %s26, 2
        %s276 = smul.addr %s275, 2
        %s277 = smul.addr %s276, 8
        %s278 = scalar_lea.vmem %s2, %s277
        %s279 = smul.u32 8, %s27
        %s280 = smul.u32 8, %s27
        %v281 = vld [vmem:[%s263] sm:$0xff]
        %v282 = vld [vmem:[%s263 + $0x8] sm:$0xff]
        %v283 = vld [vmem:[%s272] sm:$0xff]
        %v284 = vld [vmem:[%s272 + $0x8] sm:$0xff]
        %v285 = vld [vmem:[%s272 + $0x10] sm:$0xff]
        %v286 = vld [vmem:[%s272 + $0x18] sm:$0xff]
        %v287 = vld [vmem:[%s278] sm:$0xff]
        %v288 = vld [vmem:[%s278 + $0x8] sm:$0xff]
        %290 = vset.pattern.permute.xlu0 2
        %291 = vperm.xlu0 %290, %v281
        %v292 = vpop.permute.xlu0 %291
        %295 = vset.pattern.permute.xlu0 2
        %296 = vperm.xlu0 %295, %v282
        %v297 = vpop.permute.xlu0 %296
        %v303 = vperm.slane %v283, 2
        %v304 = vperm.slane %v283, 6
        %v305 = vperm.slane %v284, 2
        %v306 = vperm.slane %v284, 6
        %v307 = vperm.slane %v285, 2
        %v308 = vperm.slane %v285, 6
        %v309 = vperm.slane %v286, 2
        %v310 = vperm.slane %v286, 6
        %v319 = vperm.slane %v303, 2
        %v320 = vperm.slane %v304, 2
        %v321 = vperm.slane %v305, 2
        %v322 = vperm.slane %v306, 2
        %v323 = vperm.slane %v307, 2
        %v324 = vperm.slane %v308, 2
        %v325 = vperm.slane %v309, 2
        %v326 = vperm.slane %v310, 2
        %v327 = vmin.f32 %v292, %v319
        %v328 = vmin.f32 %v292, %v320
        %v329 = vmin.f32 %v292, %v321
        %v330 = vmin.f32 %v292, %v322
        %v331 = vmin.f32 %v292, %v323
        %v332 = vmin.f32 %v292, %v324
        %v333 = vmin.f32 %v292, %v325
        %v334 = vmin.f32 %v292, %v326
        %v335 = vmin.f32 %v297, %v319
        %v336 = vmin.f32 %v297, %v320
        %v337 = vmin.f32 %v297, %v321
        %v338 = vmin.f32 %v297, %v322
        %v339 = vmin.f32 %v297, %v323
        %v340 = vmin.f32 %v297, %v324
        %v341 = vmin.f32 %v297, %v325
        %v342 = vmin.f32 %v297, %v326
        %343 = vset.pattern.permute.xlu0 0
        %344 = vperm.xlu0 %343, %v281
        %v345 = vpop.permute.xlu0 %344
        %347 = vset.pattern.permute.xlu0 0
        %348 = vperm.xlu0 %347, %v282
        %v349 = vpop.permute.xlu0 %348
        %v351 = vperm.slane %v283, 0
        %v352 = vperm.slane %v283, 4
        %v353 = vperm.slane %v284, 0
        %v354 = vperm.slane %v284, 4
        %v355 = vperm.slane %v285, 0
        %v356 = vperm.slane %v285, 4
        %v357 = vperm.slane %v286, 0
        %v358 = vperm.slane %v286, 4
        %v367 = vperm.slane %v351, 0
        %v368 = vperm.slane %v352, 0
        %v369 = vperm.slane %v353, 0
        %v370 = vperm.slane %v354, 0
        %v371 = vperm.slane %v355, 0
        %v372 = vperm.slane %v356, 0
        %v373 = vperm.slane %v357, 0
        %v374 = vperm.slane %v358, 0
        %v375 = vmax.f32 %v345, %v367
        %v376 = vmax.f32 %v345, %v368
        %v377 = vmax.f32 %v345, %v369
        %v378 = vmax.f32 %v345, %v370
        %v379 = vmax.f32 %v345, %v371
        %v380 = vmax.f32 %v345, %v372
        %v381 = vmax.f32 %v345, %v373
        %v382 = vmax.f32 %v345, %v374
        %v383 = vmax.f32 %v349, %v367
        %v384 = vmax.f32 %v349, %v368
        %v385 = vmax.f32 %v349, %v369
        %v386 = vmax.f32 %v349, %v370
        %v387 = vmax.f32 %v349, %v371
        %v388 = vmax.f32 %v349, %v372
        %v389 = vmax.f32 %v349, %v373
        %v390 = vmax.f32 %v349, %v374
        %v391 = vsub.f32 %v327, %v375
        %v392 = vsub.f32 %v328, %v376
        %v393 = vsub.f32 %v329, %v377
        %v394 = vsub.f32 %v330, %v378
        %v395 = vsub.f32 %v331, %v379
        %v396 = vsub.f32 %v332, %v380
        %v397 = vsub.f32 %v333, %v381
        %v398 = vsub.f32 %v334, %v382
        %v399 = vsub.f32 %v335, %v383
        %v400 = vsub.f32 %v336, %v384
        %v401 = vsub.f32 %v337, %v385
        %v402 = vsub.f32 %v338, %v386
        %v403 = vsub.f32 %v339, %v387
        %v404 = vsub.f32 %v340, %v388
        %v405 = vsub.f32 %v341, %v389
        %v406 = vsub.f32 %v342, %v390
        %v407 = vmax.f32 %v391, 0.0
        %v408 = vmax.f32 %v392, 0.0
        %v409 = vmax.f32 %v393, 0.0
        %v410 = vmax.f32 %v394, 0.0
        %v411 = vmax.f32 %v395, 0.0
        %v412 = vmax.f32 %v396, 0.0
        %v413 = vmax.f32 %v397, 0.0
        %v414 = vmax.f32 %v398, 0.0
        %v415 = vmax.f32 %v399, 0.0
        %v416 = vmax.f32 %v400, 0.0
        %v417 = vmax.f32 %v401, 0.0
        %v418 = vmax.f32 %v402, 0.0
        %v419 = vmax.f32 %v403, 0.0
        %v420 = vmax.f32 %v404, 0.0
        %v421 = vmax.f32 %v405, 0.0
        %v422 = vmax.f32 %v406, 0.0
        %423 = vset.pattern.permute.xlu0 3
        %424 = vperm.xlu0 %423, %v281
        %v425 = vpop.permute.xlu0 %424
        %427 = vset.pattern.permute.xlu0 3
        %428 = vperm.xlu0 %427, %v282
        %v429 = vpop.permute.xlu0 %428
        %v431 = vperm.slane %v283, 3
        %v432 = vperm.slane %v283, 7
        %v433 = vperm.slane %v284, 3
        %v434 = vperm.slane %v284, 7
        %v435 = vperm.slane %v285, 3
        %v436 = vperm.slane %v285, 7
        %v437 = vperm.slane %v286, 3
        %v438 = vperm.slane %v286, 7
        %v447 = vperm.slane %v431, 3
        %v448 = vperm.slane %v432, 3
        %v449 = vperm.slane %v433, 3
        %v450 = vperm.slane %v434, 3
        %v451 = vperm.slane %v435, 3
        %v452 = vperm.slane %v436, 3
        %v453 = vperm.slane %v437, 3
        %v454 = vperm.slane %v438, 3
        %v455 = vmin.f32 %v425, %v447
        %v456 = vmin.f32 %v425, %v448
        %v457 = vmin.f32 %v425, %v449
        %v458 = vmin.f32 %v425, %v450
        %v459 = vmin.f32 %v425, %v451
        %v460 = vmin.f32 %v425, %v452
        %v461 = vmin.f32 %v425, %v453
        %v462 = vmin.f32 %v425, %v454
        %v463 = vmin.f32 %v429, %v447
        %v464 = vmin.f32 %v429, %v448
        %v465 = vmin.f32 %v429, %v449
        %v466 = vmin.f32 %v429, %v450
        %v467 = vmin.f32 %v429, %v451
        %v468 = vmin.f32 %v429, %v452
        %v469 = vmin.f32 %v429, %v453
        %v470 = vmin.f32 %v429, %v454
        %471 = vset.pattern.permute.xlu0 1
        %472 = vperm.xlu0 %471, %v281
        %v473 = vpop.permute.xlu0 %472
        %475 = vset.pattern.permute.xlu0 1
        %476 = vperm.xlu0 %475, %v282
        %v477 = vpop.permute.xlu0 %476
        %v479 = vperm.slane %v283, 1
        %v480 = vperm.slane %v283, 5
        %v481 = vperm.slane %v284, 1
        %v482 = vperm.slane %v284, 5
        %v483 = vperm.slane %v285, 1
        %v484 = vperm.slane %v285, 5
        %v485 = vperm.slane %v286, 1
        %v486 = vperm.slane %v286, 5
        %v495 = vperm.slane %v479, 1
        %v496 = vperm.slane %v480, 1
        %v497 = vperm.slane %v481, 1
        %v498 = vperm.slane %v482, 1
        %v499 = vperm.slane %v483, 1
        %v500 = vperm.slane %v484, 1
        %v501 = vperm.slane %v485, 1
        %v502 = vperm.slane %v486, 1
        %v503 = vmax.f32 %v473, %v495
        %v504 = vmax.f32 %v473, %v496
        %v505 = vmax.f32 %v473, %v497
        %v506 = vmax.f32 %v473, %v498
        %v507 = vmax.f32 %v473, %v499
        %v508 = vmax.f32 %v473, %v500
        %v509 = vmax.f32 %v473, %v501
        %v510 = vmax.f32 %v473, %v502
        %v511 = vmax.f32 %v477, %v495
        %v512 = vmax.f32 %v477, %v496
        %v513 = vmax.f32 %v477, %v497
        %v514 = vmax.f32 %v477, %v498
        %v515 = vmax.f32 %v477, %v499
        %v516 = vmax.f32 %v477, %v500
        %v517 = vmax.f32 %v477, %v501
        %v518 = vmax.f32 %v477, %v502
        %v519 = vsub.f32 %v455, %v503
        %v520 = vsub.f32 %v456, %v504
        %v521 = vsub.f32 %v457, %v505
        %v522 = vsub.f32 %v458, %v506
        %v523 = vsub.f32 %v459, %v507
        %v524 = vsub.f32 %v460, %v508
        %v525 = vsub.f32 %v461, %v509
        %v526 = vsub.f32 %v462, %v510
        %v527 = vsub.f32 %v463, %v511
        %v528 = vsub.f32 %v464, %v512
        %v529 = vsub.f32 %v465, %v513
        %v530 = vsub.f32 %v466, %v514
        %v531 = vsub.f32 %v467, %v515
        %v532 = vsub.f32 %v468, %v516
        %v533 = vsub.f32 %v469, %v517
        %v534 = vsub.f32 %v470, %v518
        %v535 = vmax.f32 %v519, 0.0
        %v536 = vmax.f32 %v520, 0.0
        %v537 = vmax.f32 %v521, 0.0
        %v538 = vmax.f32 %v522, 0.0
        %v539 = vmax.f32 %v523, 0.0
        %v540 = vmax.f32 %v524, 0.0
        %v541 = vmax.f32 %v525, 0.0
        %v542 = vmax.f32 %v526, 0.0
        %v543 = vmax.f32 %v527, 0.0
        %v544 = vmax.f32 %v528, 0.0
        %v545 = vmax.f32 %v529, 0.0
        %v546 = vmax.f32 %v530, 0.0
        %v547 = vmax.f32 %v531, 0.0
        %v548 = vmax.f32 %v532, 0.0
        %v549 = vmax.f32 %v533, 0.0
        %v550 = vmax.f32 %v534, 0.0
        %v551 = vmul.f32 %v407, %v535
        %v552 = vmul.f32 %v408, %v536
        %v553 = vmul.f32 %v409, %v537
        %v554 = vmul.f32 %v410, %v538
        %v555 = vmul.f32 %v411, %v539
        %v556 = vmul.f32 %v412, %v540
        %v557 = vmul.f32 %v413, %v541
        %v558 = vmul.f32 %v414, %v542
        %v559 = vmul.f32 %v415, %v543
        %v560 = vmul.f32 %v416, %v544
        %v561 = vmul.f32 %v417, %v545
        %v562 = vmul.f32 %v418, %v546
        %v563 = vmul.f32 %v419, %v547
        %v564 = vmul.f32 %v420, %v548
        %v565 = vmul.f32 %v421, %v549
        %v566 = vmul.f32 %v422, %v550
        %567 = vrot.lane.b32.xlu0 %v281, 2
        %v568 = vpop.permute.xlu0 %567
        %569 = vrot.lane.b32.xlu0 %v282, 2
        %v570 = vpop.permute.xlu0 %569
        %v573 = vsub.f32 %v281, %v568
        %v574 = vsub.f32 %v282, %v570
        %577 = vrot.lane.b32.xlu0 %v573, 127
        %v578 = vpop.permute.xlu0 %577
        %579 = vrot.lane.b32.xlu0 %v574, 127
        %v580 = vpop.permute.xlu0 %579
        %v583 = vmul.f32 %v573, %v578
        %v584 = vmul.f32 %v574, %v580
        %v585 = vrot.slane %v283, 6
        %v586 = vrot.slane %v284, 6
        %v587 = vrot.slane %v285, 6
        %v588 = vrot.slane %v286, 6
        %v593 = vsub.f32 %v283, %v585
        %v594 = vsub.f32 %v284, %v586
        %v595 = vsub.f32 %v285, %v587
        %v596 = vsub.f32 %v286, %v588
        %v601 = vrot.slane %v593, 5
        %v602 = vrot.slane %v601, 4
        %v603 = vrot.slane %v594, 5
        %v604 = vrot.slane %v603, 4
        %v605 = vrot.slane %v595, 5
        %v606 = vrot.slane %v605, 4
        %v607 = vrot.slane %v596, 5
        %v608 = vrot.slane %v607, 4
        %v613 = vmul.f32 %v593, %v602
        %v614 = vmul.f32 %v594, %v604
        %v615 = vmul.f32 %v595, %v606
        %v616 = vmul.f32 %v596, %v608
        %618 = vset.pattern.permute.xlu0 2
        %619 = vperm.xlu0 %618, %v583
        %v620 = vpop.permute.xlu0 %619
        %623 = vset.pattern.permute.xlu0 2
        %624 = vperm.xlu0 %623, %v584
        %v625 = vpop.permute.xlu0 %624
        %v631 = vperm.slane %v613, 2
        %v632 = vperm.slane %v613, 6
        %v633 = vperm.slane %v614, 2
        %v634 = vperm.slane %v614, 6
        %v635 = vperm.slane %v615, 2
        %v636 = vperm.slane %v615, 6
        %v637 = vperm.slane %v616, 2
        %v638 = vperm.slane %v616, 6
        %v647 = vperm.slane %v631, 2
        %v648 = vperm.slane %v632, 2
        %v649 = vperm.slane %v633, 2
        %v650 = vperm.slane %v634, 2
        %v651 = vperm.slane %v635, 2
        %v652 = vperm.slane %v636, 2
        %v653 = vperm.slane %v637, 2
        %v654 = vperm.slane %v638, 2
        %v655 = vadd.f32 %v620, %v647
        %v656 = vadd.f32 %v620, %v648
        %v657 = vadd.f32 %v620, %v649
        %v658 = vadd.f32 %v620, %v650
        %v659 = vadd.f32 %v620, %v651
        %v660 = vadd.f32 %v620, %v652
        %v661 = vadd.f32 %v620, %v653
        %v662 = vadd.f32 %v620, %v654
        %v663 = vadd.f32 %v625, %v647
        %v664 = vadd.f32 %v625, %v648
        %v665 = vadd.f32 %v625, %v649
        %v666 = vadd.f32 %v625, %v650
        %v667 = vadd.f32 %v625, %v651
        %v668 = vadd.f32 %v625, %v652
        %v669 = vadd.f32 %v625, %v653
        %v670 = vadd.f32 %v625, %v654
        %v671 = vsub.f32 %v655, %v551
        %v672 = vsub.f32 %v656, %v552
        %v673 = vsub.f32 %v657, %v553
        %v674 = vsub.f32 %v658, %v554
        %v675 = vsub.f32 %v659, %v555
        %v676 = vsub.f32 %v660, %v556
        %v677 = vsub.f32 %v661, %v557
        %v678 = vsub.f32 %v662, %v558
        %v679 = vsub.f32 %v663, %v559
        %v680 = vsub.f32 %v664, %v560
        %v681 = vsub.f32 %v665, %v561
        %v682 = vsub.f32 %v666, %v562
        %v683 = vsub.f32 %v667, %v563
        %v684 = vsub.f32 %v668, %v564
        %v685 = vsub.f32 %v669, %v565
        %v686 = vsub.f32 %v670, %v566
        %v687 = vmax.f32 %v671, 1e-20
        %v688 = vmax.f32 %v672, 1e-20
        %v689 = vmax.f32 %v673, 1e-20
        %v690 = vmax.f32 %v674, 1e-20
        %v691 = vmax.f32 %v675, 1e-20
        %v692 = vmax.f32 %v676, 1e-20
        %v693 = vmax.f32 %v677, 1e-20
        %v694 = vmax.f32 %v678, 1e-20
        %v695 = vmax.f32 %v679, 1e-20
        %v696 = vmax.f32 %v680, 1e-20
        %v697 = vmax.f32 %v681, 1e-20
        %v698 = vmax.f32 %v682, 1e-20
        %v699 = vmax.f32 %v683, 1e-20
        %v700 = vmax.f32 %v684, 1e-20
        %v701 = vmax.f32 %v685, 1e-20
        %v702 = vmax.f32 %v686, 1e-20
        %v703 = vrcp.pop %v687
        %v704 = vmul.f32 %v687, %v703
        %v705 = vsub.f32 1.0, %v704
        %v706 = vmul.f32 %v703, %v705
        %v707 = vadd.f32 %v703, %v706
        %vm708 = vweird.f32 %v687
        %vm709 = vweird.f32 %v703
        %vm710 = vmor %vm708, %vm709
        %v711 = vsel %vm710, %v703, %v707
        %v712 = vand.u32 2147483647, %v687
        %vm713 = vcmp.eq.f32.partialorder %v712, 8.507059e+37
        %v714 = vand.u32 %v687, 2147483648
        %v715 = vor.u32 1.1754944e-38, %v714
        %v716 = vsel %vm713, %v715, %v711
        %v717 = vrcp.pop %v688
        %v718 = vmul.f32 %v688, %v717
        %v719 = vsub.f32 1.0, %v718
        %v720 = vmul.f32 %v717, %v719
        %v721 = vadd.f32 %v717, %v720
        %vm722 = vweird.f32 %v688
        %vm723 = vweird.f32 %v717
        %vm724 = vmor %vm722, %vm723
        %v725 = vsel %vm724, %v717, %v721
        %v726 = vand.u32 2147483647, %v688
        %vm727 = vcmp.eq.f32.partialorder %v726, 8.507059e+37
        %v728 = vand.u32 %v688, 2147483648
        %v729 = vor.u32 1.1754944e-38, %v728
        %v730 = vsel %vm727, %v729, %v725
        %v731 = vrcp.pop %v689
        %v732 = vmul.f32 %v689, %v731
        %v733 = vsub.f32 1.0, %v732
        %v734 = vmul.f32 %v731, %v733
        %v735 = vadd.f32 %v731, %v734
        %vm736 = vweird.f32 %v689
        %vm737 = vweird.f32 %v731
        %vm738 = vmor %vm736, %vm737
        %v739 = vsel %vm738, %v731, %v735
        %v740 = vand.u32 2147483647, %v689
        %vm741 = vcmp.eq.f32.partialorder %v740, 8.507059e+37
        %v742 = vand.u32 %v689, 2147483648
        %v743 = vor.u32 1.1754944e-38, %v742
        %v744 = vsel %vm741, %v743, %v739
        %v745 = vrcp.pop %v690
        %v746 = vmul.f32 %v690, %v745
        %v747 = vsub.f32 1.0, %v746
        %v748 = vmul.f32 %v745, %v747
        %v749 = vadd.f32 %v745, %v748
        %vm750 = vweird.f32 %v690
        %vm751 = vweird.f32 %v745
        %vm752 = vmor %vm750, %vm751
        %v753 = vsel %vm752, %v745, %v749
        %v754 = vand.u32 2147483647, %v690
        %vm755 = vcmp.eq.f32.partialorder %v754, 8.507059e+37
        %v756 = vand.u32 %v690, 2147483648
        %v757 = vor.u32 1.1754944e-38, %v756
        %v758 = vsel %vm755, %v757, %v753
        %v759 = vrcp.pop %v691
        %v760 = vmul.f32 %v691, %v759
        %v761 = vsub.f32 1.0, %v760
        %v762 = vmul.f32 %v759, %v761
        %v763 = vadd.f32 %v759, %v762
        %vm764 = vweird.f32 %v691
        %vm765 = vweird.f32 %v759
        %vm766 = vmor %vm764, %vm765
        %v767 = vsel %vm766, %v759, %v763
        %v768 = vand.u32 2147483647, %v691
        %vm769 = vcmp.eq.f32.partialorder %v768, 8.507059e+37
        %v770 = vand.u32 %v691, 2147483648
        %v771 = vor.u32 1.1754944e-38, %v770
        %v772 = vsel %vm769, %v771, %v767
        %v773 = vrcp.pop %v692
        %v774 = vmul.f32 %v692, %v773
        %v775 = vsub.f32 1.0, %v774
        %v776 = vmul.f32 %v773, %v775
        %v777 = vadd.f32 %v773, %v776
        %vm778 = vweird.f32 %v692
        %vm779 = vweird.f32 %v773
        %vm780 = vmor %vm778, %vm779
        %v781 = vsel %vm780, %v773, %v777
        %v782 = vand.u32 2147483647, %v692
        %vm783 = vcmp.eq.f32.partialorder %v782, 8.507059e+37
        %v784 = vand.u32 %v692, 2147483648
        %v785 = vor.u32 1.1754944e-38, %v784
        %v786 = vsel %vm783, %v785, %v781
        %v787 = vrcp.pop %v693
        %v788 = vmul.f32 %v693, %v787
        %v789 = vsub.f32 1.0, %v788
        %v790 = vmul.f32 %v787, %v789
        %v791 = vadd.f32 %v787, %v790
        %vm792 = vweird.f32 %v693
        %vm793 = vweird.f32 %v787
        %vm794 = vmor %vm792, %vm793
        %v795 = vsel %vm794, %v787, %v791
        %v796 = vand.u32 2147483647, %v693
        %vm797 = vcmp.eq.f32.partialorder %v796, 8.507059e+37
        %v798 = vand.u32 %v693, 2147483648
        %v799 = vor.u32 1.1754944e-38, %v798
        %v800 = vsel %vm797, %v799, %v795
        %v801 = vrcp.pop %v694
        %v802 = vmul.f32 %v694, %v801
        %v803 = vsub.f32 1.0, %v802
        %v804 = vmul.f32 %v801, %v803
        %v805 = vadd.f32 %v801, %v804
        %vm806 = vweird.f32 %v694
        %vm807 = vweird.f32 %v801
        %vm808 = vmor %vm806, %vm807
        %v809 = vsel %vm808, %v801, %v805
        %v810 = vand.u32 2147483647, %v694
        %vm811 = vcmp.eq.f32.partialorder %v810, 8.507059e+37
        %v812 = vand.u32 %v694, 2147483648
        %v813 = vor.u32 1.1754944e-38, %v812
        %v814 = vsel %vm811, %v813, %v809
        %v815 = vrcp.pop %v695
        %v816 = vmul.f32 %v695, %v815
        %v817 = vsub.f32 1.0, %v816
        %v818 = vmul.f32 %v815, %v817
        %v819 = vadd.f32 %v815, %v818
        %vm820 = vweird.f32 %v695
        %vm821 = vweird.f32 %v815
        %vm822 = vmor %vm820, %vm821
        %v823 = vsel %vm822, %v815, %v819
        %v824 = vand.u32 2147483647, %v695
        %vm825 = vcmp.eq.f32.partialorder %v824, 8.507059e+37
        %v826 = vand.u32 %v695, 2147483648
        %v827 = vor.u32 1.1754944e-38, %v826
        %v828 = vsel %vm825, %v827, %v823
        %v829 = vrcp.pop %v696
        %v830 = vmul.f32 %v696, %v829
        %v831 = vsub.f32 1.0, %v830
        %v832 = vmul.f32 %v829, %v831
        %v833 = vadd.f32 %v829, %v832
        %vm834 = vweird.f32 %v696
        %vm835 = vweird.f32 %v829
        %vm836 = vmor %vm834, %vm835
        %v837 = vsel %vm836, %v829, %v833
        %v838 = vand.u32 2147483647, %v696
        %vm839 = vcmp.eq.f32.partialorder %v838, 8.507059e+37
        %v840 = vand.u32 %v696, 2147483648
        %v841 = vor.u32 1.1754944e-38, %v840
        %v842 = vsel %vm839, %v841, %v837
        %v843 = vrcp.pop %v697
        %v844 = vmul.f32 %v697, %v843
        %v845 = vsub.f32 1.0, %v844
        %v846 = vmul.f32 %v843, %v845
        %v847 = vadd.f32 %v843, %v846
        %vm848 = vweird.f32 %v697
        %vm849 = vweird.f32 %v843
        %vm850 = vmor %vm848, %vm849
        %v851 = vsel %vm850, %v843, %v847
        %v852 = vand.u32 2147483647, %v697
        %vm853 = vcmp.eq.f32.partialorder %v852, 8.507059e+37
        %v854 = vand.u32 %v697, 2147483648
        %v855 = vor.u32 1.1754944e-38, %v854
        %v856 = vsel %vm853, %v855, %v851
        %v857 = vrcp.pop %v698
        %v858 = vmul.f32 %v698, %v857
        %v859 = vsub.f32 1.0, %v858
        %v860 = vmul.f32 %v857, %v859
        %v861 = vadd.f32 %v857, %v860
        %vm862 = vweird.f32 %v698
        %vm863 = vweird.f32 %v857
        %vm864 = vmor %vm862, %vm863
        %v865 = vsel %vm864, %v857, %v861
        %v866 = vand.u32 2147483647, %v698
        %vm867 = vcmp.eq.f32.partialorder %v866, 8.507059e+37
        %v868 = vand.u32 %v698, 2147483648
        %v869 = vor.u32 1.1754944e-38, %v868
        %v870 = vsel %vm867, %v869, %v865
        %v871 = vrcp.pop %v699
        %v872 = vmul.f32 %v699, %v871
        %v873 = vsub.f32 1.0, %v872
        %v874 = vmul.f32 %v871, %v873
        %v875 = vadd.f32 %v871, %v874
        %vm876 = vweird.f32 %v699
        %vm877 = vweird.f32 %v871
        %vm878 = vmor %vm876, %vm877
        %v879 = vsel %vm878, %v871, %v875
        %v880 = vand.u32 2147483647, %v699
        %vm881 = vcmp.eq.f32.partialorder %v880, 8.507059e+37
        %v882 = vand.u32 %v699, 2147483648
        %v883 = vor.u32 1.1754944e-38, %v882
        %v884 = vsel %vm881, %v883, %v879
        %v885 = vrcp.pop %v700
        %v886 = vmul.f32 %v700, %v885
        %v887 = vsub.f32 1.0, %v886
        %v888 = vmul.f32 %v885, %v887
        %v889 = vadd.f32 %v885, %v888
        %vm890 = vweird.f32 %v700
        %vm891 = vweird.f32 %v885
        %vm892 = vmor %vm890, %vm891
        %v893 = vsel %vm892, %v885, %v889
        %v894 = vand.u32 2147483647, %v700
        %vm895 = vcmp.eq.f32.partialorder %v894, 8.507059e+37
        %v896 = vand.u32 %v700, 2147483648
        %v897 = vor.u32 1.1754944e-38, %v896
        %v898 = vsel %vm895, %v897, %v893
        %v899 = vrcp.pop %v701
        %v900 = vmul.f32 %v701, %v899
        %v901 = vsub.f32 1.0, %v900
        %v902 = vmul.f32 %v899, %v901
        %v903 = vadd.f32 %v899, %v902
        %vm904 = vweird.f32 %v701
        %vm905 = vweird.f32 %v899
        %vm906 = vmor %vm904, %vm905
        %v907 = vsel %vm906, %v899, %v903
        %v908 = vand.u32 2147483647, %v701
        %vm909 = vcmp.eq.f32.partialorder %v908, 8.507059e+37
        %v910 = vand.u32 %v701, 2147483648
        %v911 = vor.u32 1.1754944e-38, %v910
        %v912 = vsel %vm909, %v911, %v907
        %v913 = vrcp.pop %v702
        %v914 = vmul.f32 %v702, %v913
        %v915 = vsub.f32 1.0, %v914
        %v916 = vmul.f32 %v913, %v915
        %v917 = vadd.f32 %v913, %v916
        %vm918 = vweird.f32 %v702
        %vm919 = vweird.f32 %v913
        %vm920 = vmor %vm918, %vm919
        %v921 = vsel %vm920, %v913, %v917
        %v922 = vand.u32 2147483647, %v702
        %vm923 = vcmp.eq.f32.partialorder %v922, 8.507059e+37
        %v924 = vand.u32 %v702, 2147483648
        %v925 = vor.u32 1.1754944e-38, %v924
        %v926 = vsel %vm923, %v925, %v921
        %vm927 = vcmp.gt.f32.partialorder %v551, 0.0
        %vm928 = vcmp.gt.f32.partialorder %v552, 0.0
        %vm929 = vcmp.gt.f32.partialorder %v553, 0.0
        %vm930 = vcmp.gt.f32.partialorder %v554, 0.0
        %vm931 = vcmp.gt.f32.partialorder %v555, 0.0
        %vm932 = vcmp.gt.f32.partialorder %v556, 0.0
        %vm933 = vcmp.gt.f32.partialorder %v557, 0.0
        %vm934 = vcmp.gt.f32.partialorder %v558, 0.0
        %vm935 = vcmp.gt.f32.partialorder %v559, 0.0
        %vm936 = vcmp.gt.f32.partialorder %v560, 0.0
        %vm937 = vcmp.gt.f32.partialorder %v561, 0.0
        %vm938 = vcmp.gt.f32.partialorder %v562, 0.0
        %vm939 = vcmp.gt.f32.partialorder %v563, 0.0
        %vm940 = vcmp.gt.f32.partialorder %v564, 0.0
        %vm941 = vcmp.gt.f32.partialorder %v565, 0.0
        %vm942 = vcmp.gt.f32.partialorder %v566, 0.0
        %v943 = vmul.f32 %v551, %v716
        %v944 = vmul.f32 %v552, %v730
        %v945 = vmul.f32 %v553, %v744
        %v946 = vmul.f32 %v554, %v758
        %v947 = vmul.f32 %v555, %v772
        %v948 = vmul.f32 %v556, %v786
        %v949 = vmul.f32 %v557, %v800
        %v950 = vmul.f32 %v558, %v814
        %v951 = vmul.f32 %v559, %v828
        %v952 = vmul.f32 %v560, %v842
        %v953 = vmul.f32 %v561, %v856
        %v954 = vmul.f32 %v562, %v870
        %v955 = vmul.f32 %v563, %v884
        %v956 = vmul.f32 %v564, %v898
        %v957 = vmul.f32 %v565, %v912
        %v958 = vmul.f32 %v566, %v926
        %v959 = vsel %vm927, %v943, 0.0
        %v960 = vsel %vm928, %v944, 0.0
        %v961 = vsel %vm929, %v945, 0.0
        %v962 = vsel %vm930, %v946, 0.0
        %v963 = vsel %vm931, %v947, 0.0
        %v964 = vsel %vm932, %v948, 0.0
        %v965 = vsel %vm933, %v949, 0.0
        %v966 = vsel %vm934, %v950, 0.0
        %v967 = vsel %vm935, %v951, 0.0
        %v968 = vsel %vm936, %v952, 0.0
        %v969 = vsel %vm937, %v953, 0.0
        %v970 = vsel %vm938, %v954, 0.0
        %v971 = vsel %vm939, %v955, 0.0
        %v972 = vsel %vm940, %v956, 0.0
        %v973 = vsel %vm941, %v957, 0.0
        %v974 = vsel %vm942, %v958, 0.0
        %v975 = vmax.f32 %v959, %v967
        %v976 = vrot.slane %v975, 4
        %v977 = vmax.f32 %v975, %v976
        %v978 = vrot.slane %v977, 2
        %v979 = vmax.f32 %v977, %v978
        %v980 = vrot.slane %v979, 1
        %v981 = vmax.f32 %v979, %v980
        %v982 = vmax.f32 %v960, %v968
        %v983 = vrot.slane %v982, 4
        %v984 = vmax.f32 %v982, %v983
        %v985 = vrot.slane %v984, 2
        %v986 = vmax.f32 %v984, %v985
        %v987 = vrot.slane %v986, 1
        %v988 = vmax.f32 %v986, %v987
        %v989 = vmax.f32 %v961, %v969
        %v990 = vrot.slane %v989, 4
        %v991 = vmax.f32 %v989, %v990
        %v992 = vrot.slane %v991, 2
        %v993 = vmax.f32 %v991, %v992
        %v994 = vrot.slane %v993, 1
        %v995 = vmax.f32 %v993, %v994
        %v996 = vmax.f32 %v962, %v970
        %v997 = vrot.slane %v996, 4
        %v998 = vmax.f32 %v996, %v997
        %v999 = vrot.slane %v998, 2
        %v1000 = vmax.f32 %v998, %v999
        %v1001 = vrot.slane %v1000, 1
        %v1002 = vmax.f32 %v1000, %v1001
        %v1003 = vmax.f32 %v963, %v971
        %v1004 = vrot.slane %v1003, 4
        %v1005 = vmax.f32 %v1003, %v1004
        %v1006 = vrot.slane %v1005, 2
        %v1007 = vmax.f32 %v1005, %v1006
        %v1008 = vrot.slane %v1007, 1
        %v1009 = vmax.f32 %v1007, %v1008
        %v1010 = vmax.f32 %v964, %v972
        %v1011 = vrot.slane %v1010, 4
        %v1012 = vmax.f32 %v1010, %v1011
        %v1013 = vrot.slane %v1012, 2
        %v1014 = vmax.f32 %v1012, %v1013
        %v1015 = vrot.slane %v1014, 1
        %v1016 = vmax.f32 %v1014, %v1015
        %v1017 = vmax.f32 %v965, %v973
        %v1018 = vrot.slane %v1017, 4
        %v1019 = vmax.f32 %v1017, %v1018
        %v1020 = vrot.slane %v1019, 2
        %v1021 = vmax.f32 %v1019, %v1020
        %v1022 = vrot.slane %v1021, 1
        %v1023 = vmax.f32 %v1021, %v1022
        %v1024 = vmax.f32 %v966, %v974
        %v1025 = vrot.slane %v1024, 4
        %v1026 = vmax.f32 %v1024, %v1025
        %v1027 = vrot.slane %v1026, 2
        %v1028 = vmax.f32 %v1026, %v1027
        %v1029 = vrot.slane %v1028, 1
        %v1030 = vmax.f32 %v1028, %v1029
        %v1031 = vlaneseq
        %v1032 = vshrl.u32 %v1031, 7
        %v1033 = vadd.s32 %v1032, 8
        %v1034 = vmul.u32 %v1032, 8
        %v1035 = vmul.u32 %v1033, 8
        %v1036 = vadd.s32 %v1034, %v287
        %v1037 = vadd.s32 %v1035, %v288
        %vm1038 = vcmp.ge.f32.partialorder %v959, %v981
        %vm1039 = vcmp.ge.f32.partialorder %v960, %v988
        %vm1040 = vcmp.ge.f32.partialorder %v961, %v995
        %vm1041 = vcmp.ge.f32.partialorder %v962, %v1002
        %vm1042 = vcmp.ge.f32.partialorder %v963, %v1009
        %vm1043 = vcmp.ge.f32.partialorder %v964, %v1016
        %vm1044 = vcmp.ge.f32.partialorder %v965, %v1023
        %vm1045 = vcmp.ge.f32.partialorder %v966, %v1030
        %vm1046 = vcmp.ge.f32.partialorder %v967, %v981
        %vm1047 = vcmp.ge.f32.partialorder %v968, %v988
        %vm1048 = vcmp.ge.f32.partialorder %v969, %v995
        %vm1049 = vcmp.ge.f32.partialorder %v970, %v1002
        %vm1050 = vcmp.ge.f32.partialorder %v971, %v1009
        %vm1051 = vcmp.ge.f32.partialorder %v972, %v1016
        %vm1052 = vcmp.ge.f32.partialorder %v973, %v1023
        %vm1053 = vcmp.ge.f32.partialorder %v974, %v1030
        %1054 = vset.pattern.permute.xlu0 0
        %1055 = vperm.xlu0 %1054, %v1036
        %v1056 = vpop.permute.xlu0 %1055
        %1057 = vset.pattern.permute.xlu0 0
        %1058 = vperm.xlu0 %1057, %v1037
        %v1059 = vpop.permute.xlu0 %1058
        %v1060 = vsel %vm1038, %v1056, 128
        %v1061 = vsel %vm1039, %v1056, 128
        %v1062 = vsel %vm1040, %v1056, 128
        %v1063 = vsel %vm1041, %v1056, 128
        %v1064 = vsel %vm1042, %v1056, 128
        %v1065 = vsel %vm1043, %v1056, 128
        %v1066 = vsel %vm1044, %v1056, 128
        %v1067 = vsel %vm1045, %v1056, 128
        %v1068 = vsel %vm1046, %v1059, 128
        %v1069 = vsel %vm1047, %v1059, 128
        %v1070 = vsel %vm1048, %v1059, 128
        %v1071 = vsel %vm1049, %v1059, 128
        %v1072 = vsel %vm1050, %v1059, 128
        %v1073 = vsel %vm1051, %v1059, 128
        %v1074 = vsel %vm1052, %v1059, 128
        %v1075 = vsel %vm1053, %v1059, 128
        %vm1076 = vcmp.lt.s32.totalorder %v1060, %v1068
        %v1077 = vsel %vm1076, %v1060, %v1068
        %v1078 = vrot.slane %v1077, 4
        %vm1079 = vcmp.lt.s32.totalorder %v1077, %v1078
        %v1080 = vsel %vm1079, %v1077, %v1078
        %v1081 = vrot.slane %v1080, 2
        %vm1082 = vcmp.lt.s32.totalorder %v1080, %v1081
        %v1083 = vsel %vm1082, %v1080, %v1081
        %v1084 = vrot.slane %v1083, 1
        %vm1085 = vcmp.lt.s32.totalorder %v1083, %v1084
        %v1086 = vsel %vm1085, %v1083, %v1084
        %vm1087 = vcmp.lt.s32.totalorder %v1061, %v1069
        %v1088 = vsel %vm1087, %v1061, %v1069
        %v1089 = vrot.slane %v1088, 4
        %vm1090 = vcmp.lt.s32.totalorder %v1088, %v1089
        %v1091 = vsel %vm1090, %v1088, %v1089
        %v1092 = vrot.slane %v1091, 2
        %vm1093 = vcmp.lt.s32.totalorder %v1091, %v1092
        %v1094 = vsel %vm1093, %v1091, %v1092
        %v1095 = vrot.slane %v1094, 1
        %vm1096 = vcmp.lt.s32.totalorder %v1094, %v1095
        %v1097 = vsel %vm1096, %v1094, %v1095
        %vm1098 = vcmp.lt.s32.totalorder %v1062, %v1070
        %v1099 = vsel %vm1098, %v1062, %v1070
        %v1100 = vrot.slane %v1099, 4
        %vm1101 = vcmp.lt.s32.totalorder %v1099, %v1100
        %v1102 = vsel %vm1101, %v1099, %v1100
        %v1103 = vrot.slane %v1102, 2
        %vm1104 = vcmp.lt.s32.totalorder %v1102, %v1103
        %v1105 = vsel %vm1104, %v1102, %v1103
        %v1106 = vrot.slane %v1105, 1
        %vm1107 = vcmp.lt.s32.totalorder %v1105, %v1106
        %v1108 = vsel %vm1107, %v1105, %v1106
        %vm1109 = vcmp.lt.s32.totalorder %v1063, %v1071
        %v1110 = vsel %vm1109, %v1063, %v1071
        %v1111 = vrot.slane %v1110, 4
        %vm1112 = vcmp.lt.s32.totalorder %v1110, %v1111
        %v1113 = vsel %vm1112, %v1110, %v1111
        %v1114 = vrot.slane %v1113, 2
        %vm1115 = vcmp.lt.s32.totalorder %v1113, %v1114
        %v1116 = vsel %vm1115, %v1113, %v1114
        %v1117 = vrot.slane %v1116, 1
        %vm1118 = vcmp.lt.s32.totalorder %v1116, %v1117
        %v1119 = vsel %vm1118, %v1116, %v1117
        %vm1120 = vcmp.lt.s32.totalorder %v1064, %v1072
        %v1121 = vsel %vm1120, %v1064, %v1072
        %v1122 = vrot.slane %v1121, 4
        %vm1123 = vcmp.lt.s32.totalorder %v1121, %v1122
        %v1124 = vsel %vm1123, %v1121, %v1122
        %v1125 = vrot.slane %v1124, 2
        %vm1126 = vcmp.lt.s32.totalorder %v1124, %v1125
        %v1127 = vsel %vm1126, %v1124, %v1125
        %v1128 = vrot.slane %v1127, 1
        %vm1129 = vcmp.lt.s32.totalorder %v1127, %v1128
        %v1130 = vsel %vm1129, %v1127, %v1128
        %vm1131 = vcmp.lt.s32.totalorder %v1065, %v1073
        %v1132 = vsel %vm1131, %v1065, %v1073
        %v1133 = vrot.slane %v1132, 4
        %vm1134 = vcmp.lt.s32.totalorder %v1132, %v1133
        %v1135 = vsel %vm1134, %v1132, %v1133
        %v1136 = vrot.slane %v1135, 2
        %vm1137 = vcmp.lt.s32.totalorder %v1135, %v1136
        %v1138 = vsel %vm1137, %v1135, %v1136
        %v1139 = vrot.slane %v1138, 1
        %vm1140 = vcmp.lt.s32.totalorder %v1138, %v1139
        %v1141 = vsel %vm1140, %v1138, %v1139
        %vm1142 = vcmp.lt.s32.totalorder %v1066, %v1074
        %v1143 = vsel %vm1142, %v1066, %v1074
        %v1144 = vrot.slane %v1143, 4
        %vm1145 = vcmp.lt.s32.totalorder %v1143, %v1144
        %v1146 = vsel %vm1145, %v1143, %v1144
        %v1147 = vrot.slane %v1146, 2
        %vm1148 = vcmp.lt.s32.totalorder %v1146, %v1147
        %v1149 = vsel %vm1148, %v1146, %v1147
        %v1150 = vrot.slane %v1149, 1
        %vm1151 = vcmp.lt.s32.totalorder %v1149, %v1150
        %v1152 = vsel %vm1151, %v1149, %v1150
        %vm1153 = vcmp.lt.s32.totalorder %v1067, %v1075
        %v1154 = vsel %vm1153, %v1067, %v1075
        %v1155 = vrot.slane %v1154, 4
        %vm1156 = vcmp.lt.s32.totalorder %v1154, %v1155
        %v1157 = vsel %vm1156, %v1154, %v1155
        %v1158 = vrot.slane %v1157, 2
        %vm1159 = vcmp.lt.s32.totalorder %v1157, %v1158
        %v1160 = vsel %vm1159, %v1157, %v1158
        %v1161 = vrot.slane %v1160, 1
        %vm1162 = vcmp.lt.s32.totalorder %v1160, %v1161
        %v1163 = vsel %vm1162, %v1160, %v1161
        %v1172 = vrot.slane %v988, 7
        %v1173 = vrot.slane %v995, 6
        %v1174 = vrot.slane %v1002, 5
        %v1175 = vrot.slane %v1009, 4
        %v1176 = vrot.slane %v1016, 3
        %v1177 = vrot.slane %v1023, 2
        %v1178 = vrot.slane %v1030, 1
        %vm1179 = vcmask 1040384
        %v1180 = vsel %vm1179, %v981, %v1172
        %vm1181 = vcmask 1042434
        %v1182 = vsel %vm1181, %v1173, %v1174
        %vm1183 = vcmask 1041408
        %v1184 = vsel %vm1183, %v1180, %v1182
        %vm1185 = vcmask 1044484
        %v1186 = vsel %vm1185, %v1175, %v1176
        %vm1187 = vcmask 1046534
        %v1188 = vsel %vm1187, %v1177, %v1178
        %vm1189 = vcmask 1045508
        %v1190 = vsel %vm1189, %v1186, %v1188
        %vm1191 = vcmask 1043456
        %v1192 = vsel %vm1191, %v1184, %v1190
        %1194 = vst [vmem:[%s251] sm:$0xff] %v1192
        %v1195 = vrot.slane %v1097, 7
        %v1196 = vrot.slane %v1108, 6
        %v1197 = vrot.slane %v1119, 5
        %v1198 = vrot.slane %v1130, 4
        %v1199 = vrot.slane %v1141, 3
        %v1200 = vrot.slane %v1152, 2
        %v1201 = vrot.slane %v1163, 1
        %v1202 = vsel %vm1179, %v1086, %v1195
        %v1203 = vsel %vm1181, %v1196, %v1197
        %v1204 = vsel %vm1183, %v1202, %v1203
        %v1205 = vsel %vm1185, %v1198, %v1199
        %v1206 = vsel %vm1187, %v1200, %v1201
        %v1207 = vsel %vm1189, %v1205, %v1206
        %v1208 = vsel %vm1191, %v1204, %v1207
        %1209 = vst [vmem:[%s258] sm:$0xff] %v1208
        %s1210 = sand.u32 %s124, 1
        %s1211 = scalar_lea.sflag [#allocation3], %s1210
        %s1212 = sand.u32 %s124, 1
        %s1213 = smul.addr %s1212, 8
        %s1214 = scalar_lea.vmem [#allocation2], %s1213
        %s1215 = sand.u32 %s152, 1
        %s1216 = scalar_lea.sflag [#allocation5], %s1215
        %s1217 = sand.u32 %s152, 1
        %s1218 = smul.addr %s1217, 8
        %s1219 = scalar_lea.vmem [#allocation4], %s1218
        // Predicated region
        $region33: #{tpu_custom_call.1} parent=31 // pred_check
          %p1220 = pneg %p134
        $region34: #{tpu_custom_call.1} parent=31 // pred_check_branch
          %1222 = sbr.rel (%p1220) target = $region36
        $region35: #{tpu_custom_call.1} parent=31 // pred_region
          %s1223 = smul.u32 8, %s27
          %1225 = vsyncadd %s1211, 0
          %s1226 = smul.addr %s26, 8
          %s1227 = sadd.s32 %s1223, %s1226
          %s1228 = scalar_lea.hbm %s3, %s1227
          %s1230 = sshll.u32 %s1214, 4
          %s1231 = int_to_ptr.vmem [resolvable:$true] %s1230
          %s1232 = sshll.u32 %s1228, 4
          %s1233 = int_to_ptr.hbm [resolvable:$true] %s1232
          %1235 = dma.vmem_to_hbm [thread:$0]  %s1231, 128, %s1233, %s1211
        $region36: #{tpu_custom_call.1} parent=31 // pred_fallthru
          _
        // Predicated region
        $region37: #{tpu_custom_call.1} parent=31 // pred_check
          %p1236 = pneg %p162
        $region38: #{tpu_custom_call.1} parent=31 // pred_check_branch
          %1238 = sbr.rel (%p1236) target = $region40
        $region39: #{tpu_custom_call.1} parent=31 // pred_region
          %s1239 = smul.u32 8, %s27
          %1241 = vsyncadd %s1216, 0
          %s1242 = smul.addr %s26, 8
          %s1243 = sadd.s32 %s1239, %s1242
          %s1244 = scalar_lea.hbm %s4, %s1243
          %s1246 = sshll.u32 %s1219, 4
          %s1247 = int_to_ptr.vmem [resolvable:$true] %s1246
          %s1248 = sshll.u32 %s1244, 4
          %s1249 = int_to_ptr.hbm [resolvable:$true] %s1248
          %1251 = dma.vmem_to_hbm [thread:$0]  %s1247, 128, %s1249, %s1216
        $region40: #{tpu_custom_call.1} parent=31 // pred_fallthru
          _
      $region32: #{tpu_custom_call.1} parent=5 // pred_fallthru
        _
      %p1252 = scmp.le.s32.totalorder 2, %s17
      // Predicated region
      $region41: #{tpu_custom_call.1} parent=5 // pred_check
        %p1253 = pneg %p1252
      $region42: #{tpu_custom_call.1} parent=5 // pred_check_branch
        %1255 = sbr.rel (%p1253) target = $region44
      $region43: #{tpu_custom_call.1} parent=5 // pred_region
        %s1256 = ssub.s32 %s17, 2
        // Predicated region
        $region45: #{tpu_custom_call.1} parent=43 // pred_check
          %p1257 = pneg %p140
        $region46: #{tpu_custom_call.1} parent=43 // pred_check_branch
          %1259 = sbr.rel (%p1257) target = $region48
        $region47: #{tpu_custom_call.1} parent=43 // pred_region
          %s1260 = sand.u32 %s125, 1
          %s1261 = scalar_lea.sflag [#allocation3], %s1260
          %s1262 = sand.u32 %s125, 1
          %s1263 = smul.addr %s1262, 8
          %s1264 = scalar_lea.vmem [#allocation2], %s1263
          %1266 = dma.done %s1261, 128
        $region48: #{tpu_custom_call.1} parent=43 // pred_fallthru
          _
        // Predicated region
        $region49: #{tpu_custom_call.1} parent=43 // pred_check
          %p1267 = pneg %p168
        $region50: #{tpu_custom_call.1} parent=43 // pred_check_branch
          %1269 = sbr.rel (%p1267) target = $region52
        $region51: #{tpu_custom_call.1} parent=43 // pred_region
          %s1270 = sand.u32 %s153, 1
          %s1271 = scalar_lea.sflag [#allocation5], %s1270
          %s1272 = sand.u32 %s153, 1
          %s1273 = smul.addr %s1272, 8
          %s1274 = scalar_lea.vmem [#allocation4], %s1273
          %1276 = dma.done %s1271, 128
        $region52: #{tpu_custom_call.1} parent=43 // pred_fallthru
          _
      $region44: #{tpu_custom_call.1} parent=5 // pred_fallthru
        _
    $region6: #{tpu_custom_call.1} parent=1 // loop_footer
      %s21 = sadd.s32 1, %s17
    $region7: #{tpu_custom_call.1} parent=1 // loop_footer_branch
      %16 = sbr.rel target = $region3
    $region8: #{tpu_custom_call.1} parent=1 // loop_exit
      _
    %1277 = vsyncpa [#allocation3], 1
    %s1278 = scalar_lea.sflag [#allocation3], 1
    %1279 = vsyncpa %s1278, 1
    %1280 = vsyncpa [#allocation5], 1
    %s1281 = scalar_lea.sflag [#allocation5], 1
    %1282 = vsyncpa %s1281, 1

</llo_original>
